<compile_context>
chip_gen: v7x
topology: tpu7x:2x2x1
jax: 0.10.0
libtpu: 0.0.40
codegen_flags: <defaults>
</compile_context>

<pallas_src>
import functools

import numpy as np
import jax
import jax.numpy as jnp
from jax.experimental import pallas as pl
from jax.experimental.pallas import tpu as pltpu


# -----------------------------------------------------------------------------
# Helpers
# -----------------------------------------------------------------------------
def _pick_batch_block(n, per_item_bytes, fixed_bytes, budget_bytes):
    """Largest divisor of n whose per-block VMEM footprint fits the budget."""
    avail = max(budget_bytes - fixed_bytes, per_item_bytes)
    nb = int(max(1, min(n, avail // max(per_item_bytes, 1))))
    while n % nb:
        nb -= 1
    return nb


# -----------------------------------------------------------------------------
# Pallas kernel: 3x3 conv (padding=1) on lane-flattened NCHW tiles.
#   x_ref     : (NB, Cin, HWp)  input block, f32 (HWp = H*W padded to 128)
#   w_ref     : (Cout, 9*Cin)   weights, tap-major / channel-minor (mxu dtype)
#   b_ref     : (Cout, 1)       bias, f32
#   coord_ref : (2, HWp)        int32 row/col index per lane (-1 on pad lanes)
#   o_ref     : (NB, Cout, HWp) output block, f32
#   cols_ref  : (9*Cin, HWp)    VMEM scratch for the im2col columns
# -----------------------------------------------------------------------------
def _conv3x3_kernel(x_ref, w_ref, b_ref, coord_ref, o_ref, cols_ref, *, H, W):
    NB, Cin, HWp = x_ref.shape

    w_mat = w_ref[...]                       # (Cout, 9*Cin)
    bias = b_ref[...]                        # (Cout, 1) f32

    coords = coord_ref[...]                  # (2, HWp) int32
    row = coords[0:1, :]                     # (1, HWp)
    col = coords[1:2, :]
    in_img    = row >= 0                     # pad lanes carry row = col = -1
    not_top   = row >= 1
    not_bot   = row < (H - 1)
    not_left  = col >= 1
    not_right = col < (W - 1)

    # Tap order must match the weight row order: (dh, dw) row-major.
    taps = [(oh, ow) for oh in (-1, 0, 1) for ow in (-1, 0, 1)]

    for b in range(NB):
        xb = x_ref[b]                        # (Cin, HWp) f32 — per-batch load
        for t, (oh, ow) in enumerate(taps):
            s = oh * W + ow
            # y[:, p] = x[:, p + s]  ==  roll by (-s) (XLU, separate slot).
            shifted = xb if s == 0 else pltpu.roll(xb, shift=(-s) % HWp, axis=1)
            ok = in_img
            if oh < 0:
                ok = ok & not_top
            elif oh > 0:
                ok = ok & not_bot
            if ow < 0:
                ok = ok & not_left
            elif ow > 0:
                ok = ok & not_right
            # Select in f32 (v5e-safe), cast per tap as it enters the scratch.
            cols_ref[t * Cin:(t + 1) * Cin, :] = jnp.where(
                ok, shifted, 0.0).astype(cols_ref.dtype)

        # One MXU matmul per batch element (K = 9*Cin), f32 accumulation.
        acc = jnp.dot(w_mat, cols_ref[...],
                      preferred_element_type=jnp.float32)      # (Cout, HWp)
        o_ref[b] = (acc + bias).astype(o_ref.dtype)             # lane-dense store


def conv3x3_pallas(x_flat, w_mat, bias2d, *, H, W,
                   vmem_budget_bytes=16 * 1024 * 1024,
                   mxu_dtype=jnp.bfloat16):
    """x_flat: (N, Cin, H*W) f32 -> (N, Cout, H*W) f32 (3x3 conv, padding=1)."""
    N, Cin, HW = x_flat.shape
    assert HW == H * W
    Cout, K = w_mat.shape
    assert K == 9 * Cin

    # Pad the flattened spatial axis to a multiple of 128 for lane-dense I/O.
    HWp = max(128, ((HW + 127) // 128) * 128)
    if HWp != HW:
        x_flat = jnp.pad(x_flat, ((0, 0), (0, 0), (0, HWp - HW)))

    # Tiny per-lane (row, col) coordinate table; -1 on pad lanes kills all taps.
    lane = np.arange(HWp)
    row = np.where(lane < HW, lane // W, -1).astype(np.int32)
    col = np.where(lane < HW, lane % W, -1).astype(np.int32)
    coords = jnp.asarray(np.stack([row, col], axis=0))          # (2, HWp) int32

    # --- VMEM footprint model (includes cols scratch, temporaries, acc). ---
    cols_isz = jnp.dtype(mxu_dtype).itemsize
    per_item = 2 * (Cin + Cout) * HWp * 4            # double-buffered in + out
    fixed = HWp * (9 * Cin * cols_isz                # cols scratch
                   + 2 * Cin * 4                     # xb + rolled/masked temps
                   + Cout * 4                        # f32 accumulator
                   + 2 * 4 * 2)                      # coords (double-buffered)
    fixed += 9 * Cin * Cout * cols_isz + Cout * 4 + (1 << 20)   # params + margin
    NB = _pick_batch_block(N, per_item, fixed, vmem_budget_bytes)

    need = NB * per_item + fixed
    vmem_limit = int(min(max(2 * need, 32 * 1024 * 1024), 64 * 1024 * 1024))

    kernel = functools.partial(_conv3x3_kernel, H=H, W=W)
    out = pl.pallas_call(
        kernel,
        out_shape=jax.ShapeDtypeStruct((N, Cout, HWp), x_flat.dtype),
        grid_spec=pltpu.PrefetchScalarGridSpec(
            num_scalar_prefetch=0,
            grid=(N // NB,),
            in_specs=[
                pl.BlockSpec((NB, Cin, HWp), lambda n: (n, 0, 0)),
                pl.BlockSpec((Cout, 9 * Cin), lambda n: (0, 0)),
                pl.BlockSpec((Cout, 1), lambda n: (0, 0)),
                pl.BlockSpec((2, HWp), lambda n: (0, 0)),
            ],
            out_specs=pl.BlockSpec((NB, Cout, HWp), lambda n: (n, 0, 0)),
            scratch_shapes=[pltpu.VMEM((9 * Cin, HWp), mxu_dtype)],
        ),
        compiler_params=pltpu.CompilerParams(
            dimension_semantics=("parallel",),
            vmem_limit_bytes=vmem_limit),
    )(x_flat, w_mat, bias2d, coords)

    if HWp != HW:
        out = out[:, :, :HW]
    return out


# -----------------------------------------------------------------------------
# Glue: bilinear resize matching torch F.interpolate(mode='bilinear',
# align_corners=False) — half-pixel centers, source coords clamped.
# TODO(synk): fuse into the Pallas kernel via scalar-prefetched lo/hi/frac
#             tables to remove the resized-tensor HBM round trip.
# -----------------------------------------------------------------------------
def _bilinear_resize_nchw(x, out_h, out_w):
    n, c, in_h, in_w = x.shape

    def axis_coords(out_size, in_size):
        scale = in_size / out_size
        src = (jnp.arange(out_size, dtype=jnp.float32) + 0.5) * scale - 0.5
        src = jnp.clip(src, 0.0, in_size - 1.0)
        lo = jnp.floor(src).astype(jnp.int32)
        hi = jnp.minimum(lo + 1, in_size - 1)
        frac = src - lo.astype(jnp.float32)
        return lo, hi, frac

    h_lo, h_hi, h_frac = axis_coords(out_h, in_h)
    w_lo, w_hi, w_frac = axis_coords(out_w, in_w)

    top = x[:, :, h_lo, :]
    bot = x[:, :, h_hi, :]
    hf = h_frac[None, None, :, None]
    rows = top * (1.0 - hf) + bot * hf

    left = rows[:, :, :, w_lo]
    right = rows[:, :, :, w_hi]
    wf = w_frac[None, None, None, :]
    return left * (1.0 - wf) + right * wf


# -----------------------------------------------------------------------------
# FiLM_spatial module equivalent (NCHW in / NCHW out, like PyTorch).
# -----------------------------------------------------------------------------
class FiLMSpatialPallas:
    def __init__(self, input_channel, output_channel, key,
                 mxu_dtype=jnp.bfloat16):
        # mxu_dtype=jnp.float32 gives a bit-closer match to PyTorch's f32 conv
        # (bf16 MXU operands are the perf default; memory-bound either way).
        self.cin = input_channel
        self.cout = output_channel
        self.mxu_dtype = mxu_dtype
        k_w, k_b = jax.random.split(key)
        fan_in = input_channel * 3 * 3
        bound = 1.0 / (fan_in ** 0.5)
        # PyTorch Conv2d default init kaiming_uniform_(a=sqrt(5)) reduces to
        # uniform(+-1/sqrt(fan_in)) for both weight and bias — matched exactly.
        self.w_oihw = jax.random.uniform(
            k_w, (output_channel, input_channel, 3, 3),
            minval=-bound, maxval=bound, dtype=jnp.float32)
        self.bias = jax.random.uniform(
            k_b, (output_channel,), minval=-bound, maxval=bound,
            dtype=jnp.float32)
        # Kernel-side layouts: weight rows tap-major / channel-minor.
        self.w_mat = (jnp.transpose(self.w_oihw, (0, 2, 3, 1))
                      .reshape(output_channel, 9 * input_channel)
                      .astype(mxu_dtype))
        self.bias2d = self.bias.reshape(output_channel, 1)

    def __call__(self, x_size, embed_nchw):
        # x_size is a shape tuple (like x.shape in the PyTorch module).
        if embed_nchw.shape[-1] != x_size[-1]:
            embed_nchw = _bilinear_resize_nchw(
                embed_nchw, x_size[-2], x_size[-1])
        n, cin, h, w = embed_nchw.shape
        x_flat = embed_nchw.reshape(n, cin, h * w)          # free reshape
        beta_flat = conv3x3_pallas(x_flat, self.w_mat, self.bias2d,
                                   H=h, W=w, mxu_dtype=self.mxu_dtype)
        return beta_flat.reshape(n, self.cout, h, w)        # NCHW


if __name__ == "__main__":
    key = jax.random.PRNGKey(0)
    k_embed, k_params = jax.random.split(key)

    N, Cin, Cout = 2, 4, 8
    H, W = 16, 16          # target spatial size (from x_size)
    eh, ew = 8, 8          # embed spatial size (forces the interpolate branch)

    x_size = (N, Cout, H, W)
    embed = jax.random.normal(k_embed, (N, Cin, eh, ew), dtype=jnp.float32)

    film = FiLMSpatialPallas(Cin, Cout, k_params)
    beta = film(x_size, embed)
    beta = jax.block_until_ready(beta)

    assert beta.shape == (N, Cout, H, W), beta.shape
    assert beta.dtype == jnp.float32

    # Numerical sanity check against a pure-JAX f32 conv reference; tolerance
    # covers bf16 MXU operand rounding only.
    emb_rs = _bilinear_resize_nchw(embed, H, W)
    ref = jax.lax.conv_general_dilated(
        emb_rs, film.w_oihw, window_strides=(1, 1),
        padding=((1, 1), (1, 1)),
        dimension_numbers=("NCHW", "OIHW", "NCHW"))
    ref = ref + film.bias.reshape(1, Cout, 1, 1)
    max_err = float(jnp.max(jnp.abs(beta - ref)))
    assert max_err < 0.15, f"max abs err {max_err}"

    print("KERNEL_OK")
</pallas_src>

<mosaic_0001>
module attributes {stable_mosaic.version = 11 : i64} {
  func.func @_conv3x3_kernel(%arg0: i32, %arg1: memref<2x4x256xf32, #tpu.memory_space<vmem>>, %arg2: memref<8x36xbf16, #tpu.memory_space<vmem>>, %arg3: memref<8x1xf32, #tpu.memory_space<vmem>>, %arg4: memref<2x256xi32, #tpu.memory_space<vmem>>, %arg5: memref<2x8x256xf32, #tpu.memory_space<vmem>>, %arg6: memref<36x256xbf16, #tpu.memory_space<vmem>>) attributes {dimension_semantics = [#tpu.dimension_semantics<parallel>], iteration_bounds = array<i64: 1>, scalar_prefetch = 0 : i64, scratch_operands = 1 : i64, tpu.core_type = #tpu.core_type<tc>, window_params = [{transform_indices = @transform_0, window_bounds = array<i64: 2, 4, 256>}, {pipeline_mode = #tpu.pipeline_mode<synchronous>, transform_indices = @transform_1, window_bounds = array<i64: 8, 36>}, {pipeline_mode = #tpu.pipeline_mode<synchronous>, transform_indices = @transform_2, window_bounds = array<i64: 8, 1>}, {pipeline_mode = #tpu.pipeline_mode<synchronous>, transform_indices = @transform_3, window_bounds = array<i64: 2, 256>}, {transform_indices = @transform_4, window_bounds = array<i64: 2, 8, 256>}]} {
    %c0 = arith.constant 0 : index
    %c0_0 = arith.constant 0 : index
    %0 = vector.load %arg2[%c0, %c0_0] : memref<8x36xbf16, #tpu.memory_space<vmem>>, vector<8x36xbf16>
    %c0_1 = arith.constant 0 : index
    %c0_2 = arith.constant 0 : index
    %1 = vector.load %arg3[%c0_1, %c0_2] : memref<8x1xf32, #tpu.memory_space<vmem>>, vector<8x1xf32>
    %c0_3 = arith.constant 0 : index
    %c0_4 = arith.constant 0 : index
    %2 = vector.load %arg4[%c0_3, %c0_4] : memref<2x256xi32, #tpu.memory_space<vmem>>, vector<2x256xi32>
    %3 = vector.extract_strided_slice %2 {offsets = [0, 0], sizes = [1, 256], strides = [1, 1]} : vector<2x256xi32> to vector<1x256xi32>
    %4 = vector.extract_strided_slice %2 {offsets = [1, 0], sizes = [1, 256], strides = [1, 1]} : vector<2x256xi32> to vector<1x256xi32>
    %c0_i32 = arith.constant 0 : i32
    %5 = vector.broadcast %c0_i32 : i32 to vector<1x256xi32>
    %6 = arith.cmpi sge, %3, %5 : vector<1x256xi32>
    %c1_i32 = arith.constant 1 : i32
    %7 = vector.broadcast %c1_i32 : i32 to vector<1x256xi32>
    %8 = arith.cmpi sge, %3, %7 : vector<1x256xi32>
    %c15_i32 = arith.constant 15 : i32
    %9 = vector.broadcast %c15_i32 : i32 to vector<1x256xi32>
    %10 = arith.cmpi slt, %3, %9 : vector<1x256xi32>
    %c1_i32_5 = arith.constant 1 : i32
    %11 = vector.broadcast %c1_i32_5 : i32 to vector<1x256xi32>
    %12 = arith.cmpi sge, %4, %11 : vector<1x256xi32>
    %c15_i32_6 = arith.constant 15 : i32
    %13 = vector.broadcast %c15_i32_6 : i32 to vector<1x256xi32>
    %14 = arith.cmpi slt, %4, %13 : vector<1x256xi32>
    %c0_7 = arith.constant 0 : index
    %c0_8 = arith.constant 0 : index
    %c0_9 = arith.constant 0 : index
    %15 = vector.load %arg1[%c0_7, %c0_8, %c0_9] : memref<2x4x256xf32, #tpu.memory_space<vmem>>, vector<1x4x256xf32>
    %16 = vector.shape_cast %15 : vector<1x4x256xf32> to vector<4x256xf32>
    %c17_i32 = arith.constant 17 : i32
    %17 = tpu.dynamic_rotate %16 by %c17_i32 dim 1 : vector<4x256xf32>, i32 -> vector<4x256xf32>
    %18 = arith.andi %6, %8 : vector<1x256xi1>
    %19 = arith.andi %18, %12 : vector<1x256xi1>
    %cst = arith.constant 0.000000e+00 : f32
    %20 = vector.shape_cast %19 : vector<1x256xi1> to vector<1x256xi1>
    %21 = vector.broadcast %20 : vector<1x256xi1> to vector<4x256xi1>
    %22 = vector.broadcast %cst : f32 to vector<4x256xf32>
    %23 = arith.select %21, %17, %22 : vector<4x256xi1>, vector<4x256xf32>
    %24 = arith.truncf %23 : vector<4x256xf32> to vector<4x256xbf16>
    %c0_10 = arith.constant 0 : index
    %c0_11 = arith.constant 0 : index
    %25 = vector.load %arg6[%c0_10, %c0_11] : memref<36x256xbf16, #tpu.memory_space<vmem>>, vector<4x256xbf16>
    tpu.vector_store %arg6[%c0_10, %c0_11], %24 {strides = array<i32>} : memref<36x256xbf16, #tpu.memory_space<vmem>>, vector<4x256xbf16>,
    %c16_i32 = arith.constant 16 : i32
    %26 = tpu.dynamic_rotate %16 by %c16_i32 dim 1 : vector<4x256xf32>, i32 -> vector<4x256xf32>
    %27 = arith.andi %6, %8 : vector<1x256xi1>
    %cst_12 = arith.constant 0.000000e+00 : f32
    %28 = vector.shape_cast %27 : vector<1x256xi1> to vector<1x256xi1>
    %29 = vector.broadcast %28 : vector<1x256xi1> to vector<4x256xi1>
    %30 = vector.broadcast %cst_12 : f32 to vector<4x256xf32>
    %31 = arith.select %29, %26, %30 : vector<4x256xi1>, vector<4x256xf32>
    %32 = arith.truncf %31 : vector<4x256xf32> to vector<4x256xbf16>
    %c4 = arith.constant 4 : index
    %c0_13 = arith.constant 0 : index
    %33 = vector.load %arg6[%c4, %c0_13] : memref<36x256xbf16, #tpu.memory_space<vmem>>, vector<4x256xbf16>
    tpu.vector_store %arg6[%c4, %c0_13], %32 {strides = array<i32>} : memref<36x256xbf16, #tpu.memory_space<vmem>>, vector<4x256xbf16>,
    %c15_i32_14 = arith.constant 15 : i32
    %34 = tpu.dynamic_rotate %16 by %c15_i32_14 dim 1 : vector<4x256xf32>, i32 -> vector<4x256xf32>
    %35 = arith.andi %6, %8 : vector<1x256xi1>
    %36 = arith.andi %35, %14 : vector<1x256xi1>
    %cst_15 = arith.constant 0.000000e+00 : f32
    %37 = vector.shape_cast %36 : vector<1x256xi1> to vector<1x256xi1>
    %38 = vector.broadcast %37 : vector<1x256xi1> to vector<4x256xi1>
    %39 = vector.broadcast %cst_15 : f32 to vector<4x256xf32>
    %40 = arith.select %38, %34, %39 : vector<4x256xi1>, vector<4x256xf32>
    %41 = arith.truncf %40 : vector<4x256xf32> to vector<4x256xbf16>
    %c8 = arith.constant 8 : index
    %c0_16 = arith.constant 0 : index
    %42 = vector.load %arg6[%c8, %c0_16] : memref<36x256xbf16, #tpu.memory_space<vmem>>, vector<4x256xbf16>
    tpu.vector_store %arg6[%c8, %c0_16], %41 {strides = array<i32>} : memref<36x256xbf16, #tpu.memory_space<vmem>>, vector<4x256xbf16>,
    %c1_i32_17 = arith.constant 1 : i32
    %43 = tpu.dynamic_rotate %16 by %c1_i32_17 dim 1 : vector<4x256xf32>, i32 -> vector<4x256xf32>
    %44 = arith.andi %6, %12 : vector<1x256xi1>
    %cst_18 = arith.constant 0.000000e+00 : f32
    %45 = vector.shape_cast %44 : vector<1x256xi1> to vector<1x256xi1>
    %46 = vector.broadcast %45 : vector<1x256xi1> to vector<4x256xi1>
    %47 = vector.broadcast %cst_18 : f32 to vector<4x256xf32>
    %48 = arith.select %46, %43, %47 : vector<4x256xi1>, vector<4x256xf32>
    %49 = arith.truncf %48 : vector<4x256xf32> to vector<4x256xbf16>
    %c12 = arith.constant 12 : index
    %c0_19 = arith.constant 0 : index
    %50 = vector.load %arg6[%c12, %c0_19] : memref<36x256xbf16, #tpu.memory_space<vmem>>, vector<4x256xbf16>
    tpu.vector_store %arg6[%c12, %c0_19], %49 {strides = array<i32>} : memref<36x256xbf16, #tpu.memory_space<vmem>>, vector<4x256xbf16>,
    %cst_20 = arith.constant 0.000000e+00 : f32
    %51 = vector.shape_cast %6 : vector<1x256xi1> to vector<1x256xi1>
    %52 = vector.broadcast %51 : vector<1x256xi1> to vector<4x256xi1>
    %53 = vector.broadcast %cst_20 : f32 to vector<4x256xf32>
    %54 = arith.select %52, %16, %53 : vector<4x256xi1>, vector<4x256xf32>
    %55 = arith.truncf %54 : vector<4x256xf32> to vector<4x256xbf16>
    %c16 = arith.constant 16 : index
    %c0_21 = arith.constant 0 : index
    %56 = vector.load %arg6[%c16, %c0_21] : memref<36x256xbf16, #tpu.memory_space<vmem>>, vector<4x256xbf16>
    tpu.vector_store %arg6[%c16, %c0_21], %55 {strides = array<i32>} : memref<36x256xbf16, #tpu.memory_space<vmem>>, vector<4x256xbf16>,
    %c255_i32 = arith.constant 255 : i32
    %57 = tpu.dynamic_rotate %16 by %c255_i32 dim 1 : vector<4x256xf32>, i32 -> vector<4x256xf32>
    %58 = arith.andi %6, %14 : vector<1x256xi1>
    %cst_22 = arith.constant 0.000000e+00 : f32
    %59 = vector.shape_cast %58 : vector<1x256xi1> to vector<1x256xi1>
    %60 = vector.broadcast %59 : vector<1x256xi1> to vector<4x256xi1>
    %61 = vector.broadcast %cst_22 : f32 to vector<4x256xf32>
    %62 = arith.select %60, %57, %61 : vector<4x256xi1>, vector<4x256xf32>
    %63 = arith.truncf %62 : vector<4x256xf32> to vector<4x256xbf16>
    %c20 = arith.constant 20 : index
    %c0_23 = arith.constant 0 : index
    %64 = vector.load %arg6[%c20, %c0_23] : memref<36x256xbf16, #tpu.memory_space<vmem>>, vector<4x256xbf16>
    tpu.vector_store %arg6[%c20, %c0_23], %63 {strides = array<i32>} : memref<36x256xbf16, #tpu.memory_space<vmem>>, vector<4x256xbf16>,
    %c241_i32 = arith.constant 241 : i32
    %65 = tpu.dynamic_rotate %16 by %c241_i32 dim 1 : vector<4x256xf32>, i32 -> vector<4x256xf32>
    %66 = arith.andi %6, %10 : vector<1x256xi1>
    %67 = arith.andi %66, %12 : vector<1x256xi1>
    %cst_24 = arith.constant 0.000000e+00 : f32
    %68 = vector.shape_cast %67 : vector<1x256xi1> to vector<1x256xi1>
    %69 = vector.broadcast %68 : vector<1x256xi1> to vector<4x256xi1>
    %70 = vector.broadcast %cst_24 : f32 to vector<4x256xf32>
    %71 = arith.select %69, %65, %70 : vector<4x256xi1>, vector<4x256xf32>
    %72 = arith.truncf %71 : vector<4x256xf32> to vector<4x256xbf16>
    %c24 = arith.constant 24 : index
    %c0_25 = arith.constant 0 : index
    %73 = vector.load %arg6[%c24, %c0_25] : memref<36x256xbf16, #tpu.memory_space<vmem>>, vector<4x256xbf16>
    tpu.vector_store %arg6[%c24, %c0_25], %72 {strides = array<i32>} : memref<36x256xbf16, #tpu.memory_space<vmem>>, vector<4x256xbf16>,
    %c240_i32 = arith.constant 240 : i32
    %74 = tpu.dynamic_rotate %16 by %c240_i32 dim 1 : vector<4x256xf32>, i32 -> vector<4x256xf32>
    %75 = arith.andi %6, %10 : vector<1x256xi1>
    %cst_26 = arith.constant 0.000000e+00 : f32
    %76 = vector.shape_cast %75 : vector<1x256xi1> to vector<1x256xi1>
    %77 = vector.broadcast %76 : vector<1x256xi1> to vector<4x256xi1>
    %78 = vector.broadcast %cst_26 : f32 to vector<4x256xf32>
    %79 = arith.select %77, %74, %78 : vector<4x256xi1>, vector<4x256xf32>
    %80 = arith.truncf %79 : vector<4x256xf32> to vector<4x256xbf16>
    %c28 = arith.constant 28 : index
    %c0_27 = arith.constant 0 : index
    %81 = vector.load %arg6[%c28, %c0_27] : memref<36x256xbf16, #tpu.memory_space<vmem>>, vector<4x256xbf16>
    tpu.vector_store %arg6[%c28, %c0_27], %80 {strides = array<i32>} : memref<36x256xbf16, #tpu.memory_space<vmem>>, vector<4x256xbf16>,
    %c239_i32 = arith.constant 239 : i32
    %82 = tpu.dynamic_rotate %16 by %c239_i32 dim 1 : vector<4x256xf32>, i32 -> vector<4x256xf32>
    %83 = arith.andi %6, %10 : vector<1x256xi1>
    %84 = arith.andi %83, %14 : vector<1x256xi1>
    %cst_28 = arith.constant 0.000000e+00 : f32
    %85 = vector.shape_cast %84 : vector<1x256xi1> to vector<1x256xi1>
    %86 = vector.broadcast %85 : vector<1x256xi1> to vector<4x256xi1>
    %87 = vector.broadcast %cst_28 : f32 to vector<4x256xf32>
    %88 = arith.select %86, %82, %87 : vector<4x256xi1>, vector<4x256xf32>
    %89 = arith.truncf %88 : vector<4x256xf32> to vector<4x256xbf16>
    %c32 = arith.constant 32 : index
    %c0_29 = arith.constant 0 : index
    %90 = vector.load %arg6[%c32, %c0_29] : memref<36x256xbf16, #tpu.memory_space<vmem>>, vector<4x256xbf16>
    tpu.vector_store %arg6[%c32, %c0_29], %89 {strides = array<i32>} : memref<36x256xbf16, #tpu.memory_space<vmem>>, vector<4x256xbf16>,
    %c0_30 = arith.constant 0 : index
    %c0_31 = arith.constant 0 : index
    %91 = vector.load %arg6[%c0_30, %c0_31] : memref<36x256xbf16, #tpu.memory_space<vmem>>, vector<36x256xbf16>
    %cst_32 = arith.constant dense<0.000000e+00> : vector<8x256xf32>
    %92 = tpu.matmul %0, %91, %cst_32 {dimension_numbers = #tpu.dot_dimension_numbers<[1], [0], [0], [1], [0, 0, 1, 1], [], []>} : vector<8x36xbf16>, vector<36x256xbf16>, vector<8x256xf32> -> vector<8x256xf32>
    %93 = vector.broadcast %1 : vector<8x1xf32> to vector<8x256xf32>
    %94 = arith.addf %92, %93 : vector<8x256xf32>
    %c0_33 = arith.constant 0 : index
    %c0_34 = arith.constant 0 : index
    %c0_35 = arith.constant 0 : index
    %95 = vector.load %arg5[%c0_33, %c0_34, %c0_35] : memref<2x8x256xf32, #tpu.memory_space<vmem>>, vector<1x8x256xf32>
    %96 = vector.shape_cast %95 : vector<1x8x256xf32> to vector<8x256xf32>
    %97 = vector.shape_cast %94 : vector<8x256xf32> to vector<1x8x256xf32>
    tpu.vector_store %arg5[%c0_33, %c0_34, %c0_35], %97 {strides = array<i32>} : memref<2x8x256xf32, #tpu.memory_space<vmem>>, vector<1x8x256xf32>,
    %c1 = arith.constant 1 : index
    %c0_36 = arith.constant 0 : index
    %c0_37 = arith.constant 0 : index
    %98 = vector.load %arg1[%c1, %c0_36, %c0_37] : memref<2x4x256xf32, #tpu.memory_space<vmem>>, vector<1x4x256xf32>
    %99 = vector.shape_cast %98 : vector<1x4x256xf32> to vector<4x256xf32>
    %c17_i32_38 = arith.constant 17 : i32
    %100 = tpu.dynamic_rotate %99 by %c17_i32_38 dim 1 : vector<4x256xf32>, i32 -> vector<4x256xf32>
    %101 = arith.andi %6, %8 : vector<1x256xi1>
    %102 = arith.andi %101, %12 : vector<1x256xi1>
    %cst_39 = arith.constant 0.000000e+00 : f32
    %103 = vector.shape_cast %102 : vector<1x256xi1> to vector<1x256xi1>
    %104 = vector.broadcast %103 : vector<1x256xi1> to vector<4x256xi1>
    %105 = vector.broadcast %cst_39 : f32 to vector<4x256xf32>
    %106 = arith.select %104, %100, %105 : vector<4x256xi1>, vector<4x256xf32>
    %107 = arith.truncf %106 : vector<4x256xf32> to vector<4x256xbf16>
    %c0_40 = arith.constant 0 : index
    %c0_41 = arith.constant 0 : index
    %108 = vector.load %arg6[%c0_40, %c0_41] : memref<36x256xbf16, #tpu.memory_space<vmem>>, vector<4x256xbf16>
    tpu.vector_store %arg6[%c0_40, %c0_41], %107 {strides = array<i32>} : memref<36x256xbf16, #tpu.memory_space<vmem>>, vector<4x256xbf16>,
    %c16_i32_42 = arith.constant 16 : i32
    %109 = tpu.dynamic_rotate %99 by %c16_i32_42 dim 1 : vector<4x256xf32>, i32 -> vector<4x256xf32>
    %110 = arith.andi %6, %8 : vector<1x256xi1>
    %cst_43 = arith.constant 0.000000e+00 : f32
    %111 = vector.shape_cast %110 : vector<1x256xi1> to vector<1x256xi1>
    %112 = vector.broadcast %111 : vector<1x256xi1> to vector<4x256xi1>
    %113 = vector.broadcast %cst_43 : f32 to vector<4x256xf32>
    %114 = arith.select %112, %109, %113 : vector<4x256xi1>, vector<4x256xf32>
    %115 = arith.truncf %114 : vector<4x256xf32> to vector<4x256xbf16>
    %c4_44 = arith.constant 4 : index
    %c0_45 = arith.constant 0 : index
    %116 = vector.load %arg6[%c4_44, %c0_45] : memref<36x256xbf16, #tpu.memory_space<vmem>>, vector<4x256xbf16>
    tpu.vector_store %arg6[%c4_44, %c0_45], %115 {strides = array<i32>} : memref<36x256xbf16, #tpu.memory_space<vmem>>, vector<4x256xbf16>,
    %c15_i32_46 = arith.constant 15 : i32
    %117 = tpu.dynamic_rotate %99 by %c15_i32_46 dim 1 : vector<4x256xf32>, i32 -> vector<4x256xf32>
    %118 = arith.andi %6, %8 : vector<1x256xi1>
    %119 = arith.andi %118, %14 : vector<1x256xi1>
    %cst_47 = arith.constant 0.000000e+00 : f32
    %120 = vector.shape_cast %119 : vector<1x256xi1> to vector<1x256xi1>
    %121 = vector.broadcast %120 : vector<1x256xi1> to vector<4x256xi1>
    %122 = vector.broadcast %cst_47 : f32 to vector<4x256xf32>
    %123 = arith.select %121, %117, %122 : vector<4x256xi1>, vector<4x256xf32>
    %124 = arith.truncf %123 : vector<4x256xf32> to vector<4x256xbf16>
    %c8_48 = arith.constant 8 : index
    %c0_49 = arith.constant 0 : index
    %125 = vector.load %arg6[%c8_48, %c0_49] : memref<36x256xbf16, #tpu.memory_space<vmem>>, vector<4x256xbf16>
    tpu.vector_store %arg6[%c8_48, %c0_49], %124 {strides = array<i32>} : memref<36x256xbf16, #tpu.memory_space<vmem>>, vector<4x256xbf16>,
    %c1_i32_50 = arith.constant 1 : i32
    %126 = tpu.dynamic_rotate %99 by %c1_i32_50 dim 1 : vector<4x256xf32>, i32 -> vector<4x256xf32>
    %127 = arith.andi %6, %12 : vector<1x256xi1>
    %cst_51 = arith.constant 0.000000e+00 : f32
    %128 = vector.shape_cast %127 : vector<1x256xi1> to vector<1x256xi1>
    %129 = vector.broadcast %128 : vector<1x256xi1> to vector<4x256xi1>
    %130 = vector.broadcast %cst_51 : f32 to vector<4x256xf32>
    %131 = arith.select %129, %126, %130 : vector<4x256xi1>, vector<4x256xf32>
    %132 = arith.truncf %131 : vector<4x256xf32> to vector<4x256xbf16>
    %c12_52 = arith.constant 12 : index
    %c0_53 = arith.constant 0 : index
    %133 = vector.load %arg6[%c12_52, %c0_53] : memref<36x256xbf16, #tpu.memory_space<vmem>>, vector<4x256xbf16>
    tpu.vector_store %arg6[%c12_52, %c0_53], %132 {strides = array<i32>} : memref<36x256xbf16, #tpu.memory_space<vmem>>, vector<4x256xbf16>,
    %cst_54 = arith.constant 0.000000e+00 : f32
    %134 = vector.shape_cast %6 : vector<1x256xi1> to vector<1x256xi1>
    %135 = vector.broadcast %134 : vector<1x256xi1> to vector<4x256xi1>
    %136 = vector.broadcast %cst_54 : f32 to vector<4x256xf32>
    %137 = arith.select %135, %99, %136 : vector<4x256xi1>, vector<4x256xf32>
    %138 = arith.truncf %137 : vector<4x256xf32> to vector<4x256xbf16>
    %c16_55 = arith.constant 16 : index
    %c0_56 = arith.constant 0 : index
    %139 = vector.load %arg6[%c16_55, %c0_56] : memref<36x256xbf16, #tpu.memory_space<vmem>>, vector<4x256xbf16>
    tpu.vector_store %arg6[%c16_55, %c0_56], %138 {strides = array<i32>} : memref<36x256xbf16, #tpu.memory_space<vmem>>, vector<4x256xbf16>,
    %c255_i32_57 = arith.constant 255 : i32
    %140 = tpu.dynamic_rotate %99 by %c255_i32_57 dim 1 : vector<4x256xf32>, i32 -> vector<4x256xf32>
    %141 = arith.andi %6, %14 : vector<1x256xi1>
    %cst_58 = arith.constant 0.000000e+00 : f32
    %142 = vector.shape_cast %141 : vector<1x256xi1> to vector<1x256xi1>
    %143 = vector.broadcast %142 : vector<1x256xi1> to vector<4x256xi1>
    %144 = vector.broadcast %cst_58 : f32 to vector<4x256xf32>
    %145 = arith.select %143, %140, %144 : vector<4x256xi1>, vector<4x256xf32>
    %146 = arith.truncf %145 : vector<4x256xf32> to vector<4x256xbf16>
    %c20_59 = arith.constant 20 : index
    %c0_60 = arith.constant 0 : index
    %147 = vector.load %arg6[%c20_59, %c0_60] : memref<36x256xbf16, #tpu.memory_space<vmem>>, vector<4x256xbf16>
    tpu.vector_store %arg6[%c20_59, %c0_60], %146 {strides = array<i32>} : memref<36x256xbf16, #tpu.memory_space<vmem>>, vector<4x256xbf16>,
    %c241_i32_61 = arith.constant 241 : i32
    %148 = tpu.dynamic_rotate %99 by %c241_i32_61 dim 1 : vector<4x256xf32>, i32 -> vector<4x256xf32>
    %149 = arith.andi %6, %10 : vector<1x256xi1>
    %150 = arith.andi %149, %12 : vector<1x256xi1>
    %cst_62 = arith.constant 0.000000e+00 : f32
    %151 = vector.shape_cast %150 : vector<1x256xi1> to vector<1x256xi1>
    %152 = vector.broadcast %151 : vector<1x256xi1> to vector<4x256xi1>
    %153 = vector.broadcast %cst_62 : f32 to vector<4x256xf32>
    %154 = arith.select %152, %148, %153 : vector<4x256xi1>, vector<4x256xf32>
    %155 = arith.truncf %154 : vector<4x256xf32> to vector<4x256xbf16>
    %c24_63 = arith.constant 24 : index
    %c0_64 = arith.constant 0 : index
    %156 = vector.load %arg6[%c24_63, %c0_64] : memref<36x256xbf16, #tpu.memory_space<vmem>>, vector<4x256xbf16>
    tpu.vector_store %arg6[%c24_63, %c0_64], %155 {strides = array<i32>} : memref<36x256xbf16, #tpu.memory_space<vmem>>, vector<4x256xbf16>,
    %c240_i32_65 = arith.constant 240 : i32
    %157 = tpu.dynamic_rotate %99 by %c240_i32_65 dim 1 : vector<4x256xf32>, i32 -> vector<4x256xf32>
    %158 = arith.andi %6, %10 : vector<1x256xi1>
    %cst_66 = arith.constant 0.000000e+00 : f32
    %159 = vector.shape_cast %158 : vector<1x256xi1> to vector<1x256xi1>
    %160 = vector.broadcast %159 : vector<1x256xi1> to vector<4x256xi1>
    %161 = vector.broadcast %cst_66 : f32 to vector<4x256xf32>
    %162 = arith.select %160, %157, %161 : vector<4x256xi1>, vector<4x256xf32>
    %163 = arith.truncf %162 : vector<4x256xf32> to vector<4x256xbf16>
    %c28_67 = arith.constant 28 : index
    %c0_68 = arith.constant 0 : index
    %164 = vector.load %arg6[%c28_67, %c0_68] : memref<36x256xbf16, #tpu.memory_space<vmem>>, vector<4x256xbf16>
    tpu.vector_store %arg6[%c28_67, %c0_68], %163 {strides = array<i32>} : memref<36x256xbf16, #tpu.memory_space<vmem>>, vector<4x256xbf16>,
    %c239_i32_69 = arith.constant 239 : i32
    %165 = tpu.dynamic_rotate %99 by %c239_i32_69 dim 1 : vector<4x256xf32>, i32 -> vector<4x256xf32>
    %166 = arith.andi %6, %10 : vector<1x256xi1>
    %167 = arith.andi %166, %14 : vector<1x256xi1>
    %cst_70 = arith.constant 0.000000e+00 : f32
    %168 = vector.shape_cast %167 : vector<1x256xi1> to vector<1x256xi1>
    %169 = vector.broadcast %168 : vector<1x256xi1> to vector<4x256xi1>
    %170 = vector.broadcast %cst_70 : f32 to vector<4x256xf32>
    %171 = arith.select %169, %165, %170 : vector<4x256xi1>, vector<4x256xf32>
    %172 = arith.truncf %171 : vector<4x256xf32> to vector<4x256xbf16>
    %c32_71 = arith.constant 32 : index
    %c0_72 = arith.constant 0 : index
    %173 = vector.load %arg6[%c32_71, %c0_72] : memref<36x256xbf16, #tpu.memory_space<vmem>>, vector<4x256xbf16>
    tpu.vector_store %arg6[%c32_71, %c0_72], %172 {strides = array<i32>} : memref<36x256xbf16, #tpu.memory_space<vmem>>, vector<4x256xbf16>,
    %c0_73 = arith.constant 0 : index
    %c0_74 = arith.constant 0 : index
    %174 = vector.load %arg6[%c0_73, %c0_74] : memref<36x256xbf16, #tpu.memory_space<vmem>>, vector<36x256xbf16>
    %cst_75 = arith.constant dense<0.000000e+00> : vector<8x256xf32>
    %175 = tpu.matmul %0, %174, %cst_75 {dimension_numbers = #tpu.dot_dimension_numbers<[1], [0], [0], [1], [0, 0, 1, 1], [], []>} : vector<8x36xbf16>, vector<36x256xbf16>, vector<8x256xf32> -> vector<8x256xf32>
    %176 = vector.broadcast %1 : vector<8x1xf32> to vector<8x256xf32>
    %177 = arith.addf %175, %176 : vector<8x256xf32>
    %c1_76 = arith.constant 1 : index
    %c0_77 = arith.constant 0 : index
    %c0_78 = arith.constant 0 : index
    %178 = vector.load %arg5[%c1_76, %c0_77, %c0_78] : memref<2x8x256xf32, #tpu.memory_space<vmem>>, vector<1x8x256xf32>
    %179 = vector.shape_cast %178 : vector<1x8x256xf32> to vector<8x256xf32>
    %180 = vector.shape_cast %177 : vector<8x256xf32> to vector<1x8x256xf32>
    tpu.vector_store %arg5[%c1_76, %c0_77, %c0_78], %180 {strides = array<i32>} : memref<2x8x256xf32, #tpu.memory_space<vmem>>, vector<1x8x256xf32>,
    return
  }
  func.func @transform_0(%arg0: i32) -> (i32, i32, i32) {
    %c0_i32 = arith.constant 0 : i32
    %c0_i32_0 = arith.constant 0 : i32
    %c0_i32_1 = arith.constant 0 : i32
    return %arg0, %c0_i32, %c0_i32_0 : i32, i32, i32
  }
  func.func @transform_1(%arg0: i32) -> (i32, i32) {
    %c0_i32 = arith.constant 0 : i32
    %c0_i32_0 = arith.constant 0 : i32
    %c0_i32_1 = arith.constant 0 : i32
    return %c0_i32, %c0_i32_0 : i32, i32
  }
  func.func @transform_2(%arg0: i32) -> (i32, i32) {
    %c0_i32 = arith.constant 0 : i32
    %c0_i32_0 = arith.constant 0 : i32
    %c0_i32_1 = arith.constant 0 : i32
    return %c0_i32, %c0_i32_0 : i32, i32
  }
  func.func @transform_3(%arg0: i32) -> (i32, i32) {
    %c0_i32 = arith.constant 0 : i32
    %c0_i32_0 = arith.constant 0 : i32
    %c0_i32_1 = arith.constant 0 : i32
    return %c0_i32, %c0_i32_0 : i32, i32
  }
  func.func @transform_4(%arg0: i32) -> (i32, i32, i32) {
    %c0_i32 = arith.constant 0 : i32
    %c0_i32_0 = arith.constant 0 : i32
    %c0_i32_1 = arith.constant 0 : i32
    return %arg0, %c0_i32, %c0_i32_0 : i32, i32, i32
  }
}

</mosaic_0001>

<llo_original>
// kernel: tpu_custom_call.1
$region0: #{tpu_custom_call.1}
  #allocation0 [shape = 'u32[]', space=smem, size = 0x4, offset = 0x4, fixed_abs, tag = 'smem constant byte address 0x4 - core index']
  #allocation1 [shape = 'u32[144,128]{1,0:T(1,128)}', space=vmem, size = 0x12000, scoped, tag = 'internal scratch']
  #allocation2 [shape = 'bf16[36,256]{1,0:T(8,128)(2,1)}', space=vmem, size = 0x5000, scoped, tag = 'scratch operand']
  %s0 = inlined_call_operand.hbm [shape: f32[2,4,256], index: 0, kind: input, shape index: {}]
  %s1 = inlined_call_operand.vmem [shape: bf16[8,36], index: 1, kind: input, shape index: {}]
  %s2 = inlined_call_operand.vmem [shape: f32[8,1], index: 2, kind: input, shape index: {}]
  %s3 = inlined_call_operand.vmem [shape: s32[2,256], index: 3, kind: input, shape index: {}]
  %s4 = inlined_call_operand.hbm [shape: f32[2,8,256], index: 4, kind: output, shape index: {}]
  %s5 = sld [smem:[#allocation0]]
  $region30: #{tpu_custom_call.1} parent=0
    _
  %s7 = ssub.s32 1, %s5
  %s8 = scalar_select 0, %s7, %s5
  $region1: #{tpu_custom_call.1} parent=0
    #allocation3 [shape = 'u8[8192]{0}', space=vmem, size = 0x2000, scoped, tag = 'input window, operand 0, single buffered']
    #allocation4 [shape = 's32[1]{0}', space=sflag, size = 0x4, scoped, tag = 'scoped memory for tpu_custom_call.1']
    #allocation5 [shape = 's32[1]{0}', space=sflag, size = 0x4, scoped, tag = 'scoped memory for tpu_custom_call.1']
    #allocation6 [shape = 'u8[16384]{0}', space=vmem, size = 0x4000, scoped, tag = 'output window, operand 0, single buffered']
    %9 = vsyncpa [#allocation4], 0
    %10 = vsyncpa [#allocation5], 0
    // Predicated region
    $region2: #{tpu_custom_call.1} parent=1 // pred_check
      _
    $region3: #{tpu_custom_call.1} parent=1 // pred_check_branch
      %12 = sbr.rel (0) target = $region5
    $region4: #{tpu_custom_call.1} parent=1 // pred_region
      %s14 = ssub.s32 256, 256
      %15 = vsyncadd [#allocation4], %s14
      %s16 = sshll.u32 [#allocation3], 4
      %s17 = int_to_ptr.vmem [resolvable:$true] %s16
      %22 = dma.hbm_to_vmem [thread:$0]  %s0, 256, %s17, [#allocation4], 128, 128, 8
    $region5: #{tpu_custom_call.1} parent=1 // pred_fallthru
      _
    // Predicated region
    $region6: #{tpu_custom_call.1} parent=1 // pred_check
      _
    $region7: #{tpu_custom_call.1} parent=1 // pred_check_branch
      %24 = sbr.rel (0) target = $region9
    $region8: #{tpu_custom_call.1} parent=1 // pred_region
      _
    $region9: #{tpu_custom_call.1} parent=1 // pred_fallthru
      _
    // Predicated region
    $region10: #{tpu_custom_call.1} parent=1 // pred_check
      _
    $region11: #{tpu_custom_call.1} parent=1 // pred_check_branch
      %26 = sbr.rel (0) target = $region13
    $region12: #{tpu_custom_call.1} parent=1 // pred_region
      _
    $region13: #{tpu_custom_call.1} parent=1 // pred_fallthru
      _
    // Predicated region
    $region14: #{tpu_custom_call.1} parent=1 // pred_check
      _
    $region15: #{tpu_custom_call.1} parent=1 // pred_check_branch
      %28 = sbr.rel (0) target = $region17
    $region16: #{tpu_custom_call.1} parent=1 // pred_region
      _
    $region17: #{tpu_custom_call.1} parent=1 // pred_fallthru
      _
    // Predicated region
    $region18: #{tpu_custom_call.1} parent=1 // pred_check
      _
    $region19: #{tpu_custom_call.1} parent=1 // pred_check_branch
      %30 = sbr.rel (0) target = $region21
    $region20: #{tpu_custom_call.1} parent=1 // pred_region
      %31 = dma.done [#allocation4], 256
    $region21: #{tpu_custom_call.1} parent=1 // pred_fallthru
      _
    %v33 = vld [vmem:[%s1] sm:$0xf]
    %v34 = vld [vmem:[%s2] sm:$0xff]
    %v35 = vld [vmem:[%s3] sm:$0xf]
    %vm36 = vcmp.ge.s32.totalorder %v35, 0
    %vm37 = vcmp.ge.s32.totalorder %v35, 1
    %vm38 = vcmp.lt.s32.totalorder %v35, 15
    %v39 = vld [vmem:[#allocation3] sm:$0xff]
    %v41 = vcombine.high %v39, %v39
    %43 = vrot.lane.b32.xlu0 %v39, 17
    %v44 = vpop.permute.xlu0 %43
    %45 = vrot.lane.b32.xlu0 %v41, 17
    %v46 = vpop.permute.xlu0 %45
    %v47 = vlaneseq
    %v48 = vand.u32 %v47, 127
    %vm49 = vcmp.lt.s32.totalorder %v48, 17
    %v50 = vsel %vm49, %v44, %v46
    %v51 = vsel %vm49, %v46, %v44
    %vm52 = vmand %vm36, %vm37
    %v53 = vsel %vm37, 1, 0
    %v54 = vrot.slane %v53, 7
    %v55 = vrot.slane %v54, 2
    %vm56 = vcmp.ne.s32.totalorder %v55, 0
    %vm57 = vmand %vm52, %vm56
    %v58 = vsel %vm57, 1, 0
    %v59 = vlaneseq
    %v60 = vshrl.u32 %v59, 7
    %v61 = vsub.s32 0, %v60
    %v62 = vrot.slane %v58, %v61
    %v63 = vlaneseq
    %v64 = vshrl.u32 %v63, 7
    %v65 = vsub.s32 2, %v64
    %v66 = vrot.slane %v58, %v65
    %v67 = vlaneseq
    %v68 = vshrl.u32 %v67, 7
    %v69 = vsub.s32 0, %v68
    %v70 = vrot.slane %v62, %v69
    %v71 = vlaneseq
    %v72 = vshrl.u32 %v71, 7
    %v73 = vsub.s32 0, %v72
    %v74 = vrot.slane %v66, %v73
    %vm75 = vcmp.eq.s32.totalorder %v70, 1
    %vm76 = vcmp.eq.s32.totalorder %v74, 1
    %v77 = vsel %vm75, %v51, 0.0
    %v78 = vsel %vm76, %v50, 0.0
    %v79 = vpack.c.bf16 %v77, %v77
    %v80 = vpack.c.bf16 %v78, %v78
    %v83 = vunpack.c.l.b16 %v79
    %v84 = vunpack.c.l.b16 %v80
    %v85 = vpack.c.b16 %v84, %v83
    %87 = vst [vmem:[#allocation2] sm:$0x33] %v85
    %88 = vrot.lane.b32.xlu0 %v39, 16
    %v89 = vpop.permute.xlu0 %88
    %90 = vrot.lane.b32.xlu0 %v41, 16
    %v91 = vpop.permute.xlu0 %90
    %vm92 = vcmp.lt.s32.totalorder %v48, 16
    %v93 = vsel %vm92, %v89, %v91
    %v94 = vsel %vm92, %v91, %v89
    %v95 = vsel %vm52, 1, 0
    %v96 = vlaneseq
    %v97 = vshrl.u32 %v96, 7
    %v98 = vsub.s32 0, %v97
    %v99 = vrot.slane %v95, %v98
    %v100 = vlaneseq
    %v101 = vshrl.u32 %v100, 7
    %v102 = vsub.s32 2, %v101
    %v103 = vrot.slane %v95, %v102
    %v104 = vlaneseq
    %v105 = vshrl.u32 %v104, 7
    %v106 = vsub.s32 0, %v105
    %v107 = vrot.slane %v99, %v106
    %v108 = vlaneseq
    %v109 = vshrl.u32 %v108, 7
    %v110 = vsub.s32 0, %v109
    %v111 = vrot.slane %v103, %v110
    %vm112 = vcmp.eq.s32.totalorder %v107, 1
    %vm113 = vcmp.eq.s32.totalorder %v111, 1
    %v114 = vsel %vm112, %v94, 0.0
    %v115 = vsel %vm113, %v93, 0.0
    %v116 = vpack.c.bf16 %v114, %v114
    %v117 = vpack.c.bf16 %v115, %v115
    %v120 = vunpack.c.l.b16 %v116
    %v121 = vunpack.c.l.b16 %v117
    %v122 = vpack.c.b16 %v121, %v120
    %v123 = vrot.slane %v122, 6
    %125 = vst [vmem:[#allocation2] sm:$0xcc] %v123
    %126 = vrot.lane.b32.xlu0 %v39, 15
    %v127 = vpop.permute.xlu0 %126
    %128 = vrot.lane.b32.xlu0 %v41, 15
    %v129 = vpop.permute.xlu0 %128
    %vm130 = vcmp.lt.s32.totalorder %v48, 15
    %v131 = vsel %vm130, %v127, %v129
    %v132 = vsel %vm130, %v129, %v127
    %v133 = vsel %vm38, 1, 0
    %v134 = vrot.slane %v133, 7
    %v135 = vrot.slane %v134, 2
    %vm136 = vcmp.ne.s32.totalorder %v135, 0
    %vm137 = vmand %vm52, %vm136
    %v138 = vsel %vm137, 1, 0
    %v139 = vlaneseq
    %v140 = vshrl.u32 %v139, 7
    %v141 = vsub.s32 0, %v140
    %v142 = vrot.slane %v138, %v141
    %v143 = vlaneseq
    %v144 = vshrl.u32 %v143, 7
    %v145 = vsub.s32 2, %v144
    %v146 = vrot.slane %v138, %v145
    %v147 = vlaneseq
    %v148 = vshrl.u32 %v147, 7
    %v149 = vsub.s32 0, %v148
    %v150 = vrot.slane %v142, %v149
    %v151 = vlaneseq
    %v152 = vshrl.u32 %v151, 7
    %v153 = vsub.s32 0, %v152
    %v154 = vrot.slane %v146, %v153
    %vm155 = vcmp.eq.s32.totalorder %v150, 1
    %vm156 = vcmp.eq.s32.totalorder %v154, 1
    %v157 = vsel %vm155, %v132, 0.0
    %v158 = vsel %vm156, %v131, 0.0
    %v159 = vpack.c.bf16 %v157, %v157
    %v160 = vpack.c.bf16 %v158, %v158
    %v163 = vunpack.c.l.b16 %v159
    %v164 = vunpack.c.l.b16 %v160
    %v165 = vpack.c.b16 %v164, %v163
    %167 = vst [vmem:[#allocation2 + $0x8] sm:$0x33] %v165
    %168 = vrot.lane.b32.xlu0 %v39, 1
    %v169 = vpop.permute.xlu0 %168
    %170 = vrot.lane.b32.xlu0 %v41, 1
    %v171 = vpop.permute.xlu0 %170
    %vm172 = vcmp.lt.s32.totalorder %v48, 1
    %v173 = vsel %vm172, %v169, %v171
    %v174 = vsel %vm172, %v171, %v169
    %vm175 = vmand %vm36, %vm56
    %v176 = vsel %vm175, 1, 0
    %v177 = vlaneseq
    %v178 = vshrl.u32 %v177, 7
    %v179 = vsub.s32 0, %v178
    %v180 = vrot.slane %v176, %v179
    %v181 = vlaneseq
    %v182 = vshrl.u32 %v181, 7
    %v183 = vsub.s32 2, %v182
    %v184 = vrot.slane %v176, %v183
    %v185 = vlaneseq
    %v186 = vshrl.u32 %v185, 7
    %v187 = vsub.s32 0, %v186
    %v188 = vrot.slane %v180, %v187
    %v189 = vlaneseq
    %v190 = vshrl.u32 %v189, 7
    %v191 = vsub.s32 0, %v190
    %v192 = vrot.slane %v184, %v191
    %vm193 = vcmp.eq.s32.totalorder %v188, 1
    %vm194 = vcmp.eq.s32.totalorder %v192, 1
    %v195 = vsel %vm193, %v174, 0.0
    %v196 = vsel %vm194, %v173, 0.0
    %v197 = vpack.c.bf16 %v195, %v195
    %v198 = vpack.c.bf16 %v196, %v196
    %v201 = vunpack.c.l.b16 %v197
    %v202 = vunpack.c.l.b16 %v198
    %v203 = vpack.c.b16 %v202, %v201
    %v204 = vrot.slane %v203, 6
    %206 = vst [vmem:[#allocation2 + $0x8] sm:$0xcc] %v204
    %v207 = vsel %vm36, 1, 0
    %v208 = vlaneseq
    %v209 = vshrl.u32 %v208, 7
    %v210 = vsub.s32 0, %v209
    %v211 = vrot.slane %v207, %v210
    %v212 = vlaneseq
    %v213 = vshrl.u32 %v212, 7
    %v214 = vsub.s32 2, %v213
    %v215 = vrot.slane %v207, %v214
    %v216 = vlaneseq
    %v217 = vshrl.u32 %v216, 7
    %v218 = vsub.s32 0, %v217
    %v219 = vrot.slane %v211, %v218
    %v220 = vlaneseq
    %v221 = vshrl.u32 %v220, 7
    %v222 = vsub.s32 0, %v221
    %v223 = vrot.slane %v215, %v222
    %vm224 = vcmp.eq.s32.totalorder %v219, 1
    %vm225 = vcmp.eq.s32.totalorder %v223, 1
    %v226 = vsel %vm224, %v39, 0.0
    %v227 = vsel %vm225, %v41, 0.0
    %v228 = vpack.c.bf16 %v226, %v226
    %v229 = vpack.c.bf16 %v227, %v227
    %v232 = vunpack.c.l.b16 %v228
    %v233 = vunpack.c.l.b16 %v229
    %v234 = vpack.c.b16 %v233, %v232
    %236 = vst [vmem:[#allocation2 + $0x10] sm:$0x33] %v234
    %237 = vrot.lane.b32.xlu0 %v39, 127
    %v238 = vpop.permute.xlu0 %237
    %239 = vrot.lane.b32.xlu0 %v41, 127
    %v240 = vpop.permute.xlu0 %239
    %vm241 = vcmp.lt.s32.totalorder %v48, 127
    %v242 = vsel %vm241, %v238, %v240
    %v243 = vsel %vm241, %v240, %v238
    %vm244 = vmand %vm36, %vm136
    %v245 = vsel %vm244, 1, 0
    %v246 = vlaneseq
    %v247 = vshrl.u32 %v246, 7
    %v248 = vsub.s32 0, %v247
    %v249 = vrot.slane %v245, %v248
    %v250 = vlaneseq
    %v251 = vshrl.u32 %v250, 7
    %v252 = vsub.s32 2, %v251
    %v253 = vrot.slane %v245, %v252
    %v254 = vlaneseq
    %v255 = vshrl.u32 %v254, 7
    %v256 = vsub.s32 0, %v255
    %v257 = vrot.slane %v249, %v256
    %v258 = vlaneseq
    %v259 = vshrl.u32 %v258, 7
    %v260 = vsub.s32 0, %v259
    %v261 = vrot.slane %v253, %v260
    %vm262 = vcmp.eq.s32.totalorder %v257, 1
    %vm263 = vcmp.eq.s32.totalorder %v261, 1
    %v264 = vsel %vm262, %v242, 0.0
    %v265 = vsel %vm263, %v243, 0.0
    %v266 = vpack.c.bf16 %v264, %v264
    %v267 = vpack.c.bf16 %v265, %v265
    %v270 = vunpack.c.l.b16 %v266
    %v271 = vunpack.c.l.b16 %v267
    %v272 = vpack.c.b16 %v271, %v270
    %v273 = vrot.slane %v272, 6
    %275 = vst [vmem:[#allocation2 + $0x10] sm:$0xcc] %v273
    %276 = vrot.lane.b32.xlu0 %v39, 113
    %v277 = vpop.permute.xlu0 %276
    %278 = vrot.lane.b32.xlu0 %v41, 113
    %v279 = vpop.permute.xlu0 %278
    %vm280 = vcmp.lt.s32.totalorder %v48, 113
    %v281 = vsel %vm280, %v277, %v279
    %v282 = vsel %vm280, %v279, %v277
    %vm283 = vmand %vm36, %vm38
    %vm284 = vmand %vm283, %vm56
    %v285 = vsel %vm284, 1, 0
    %v286 = vlaneseq
    %v287 = vshrl.u32 %v286, 7
    %v288 = vsub.s32 0, %v287
    %v289 = vrot.slane %v285, %v288
    %v290 = vlaneseq
    %v291 = vshrl.u32 %v290, 7
    %v292 = vsub.s32 2, %v291
    %v293 = vrot.slane %v285, %v292
    %v294 = vlaneseq
    %v295 = vshrl.u32 %v294, 7
    %v296 = vsub.s32 0, %v295
    %v297 = vrot.slane %v289, %v296
    %v298 = vlaneseq
    %v299 = vshrl.u32 %v298, 7
    %v300 = vsub.s32 0, %v299
    %v301 = vrot.slane %v293, %v300
    %vm302 = vcmp.eq.s32.totalorder %v297, 1
    %vm303 = vcmp.eq.s32.totalorder %v301, 1
    %v304 = vsel %vm302, %v281, 0.0
    %v305 = vsel %vm303, %v282, 0.0
    %v306 = vpack.c.bf16 %v304, %v304
    %v307 = vpack.c.bf16 %v305, %v305
    %v310 = vunpack.c.l.b16 %v306
    %v311 = vunpack.c.l.b16 %v307
    %v312 = vpack.c.b16 %v311, %v310
    %314 = vst [vmem:[#allocation2 + $0x18] sm:$0x33] %v312
    %315 = vrot.lane.b32.xlu0 %v39, 112
    %v316 = vpop.permute.xlu0 %315
    %317 = vrot.lane.b32.xlu0 %v41, 112
    %v318 = vpop.permute.xlu0 %317
    %vm319 = vcmp.lt.s32.totalorder %v48, 112
    %v320 = vsel %vm319, %v316, %v318
    %v321 = vsel %vm319, %v318, %v316
    %v322 = vsel %vm283, 1, 0
    %v323 = vlaneseq
    %v324 = vshrl.u32 %v323, 7
    %v325 = vsub.s32 0, %v324
    %v326 = vrot.slane %v322, %v325
    %v327 = vlaneseq
    %v328 = vshrl.u32 %v327, 7
    %v329 = vsub.s32 2, %v328
    %v330 = vrot.slane %v322, %v329
    %v331 = vlaneseq
    %v332 = vshrl.u32 %v331, 7
    %v333 = vsub.s32 0, %v332
    %v334 = vrot.slane %v326, %v333
    %v335 = vlaneseq
    %v336 = vshrl.u32 %v335, 7
    %v337 = vsub.s32 0, %v336
    %v338 = vrot.slane %v330, %v337
    %vm339 = vcmp.eq.s32.totalorder %v334, 1
    %vm340 = vcmp.eq.s32.totalorder %v338, 1
    %v341 = vsel %vm339, %v320, 0.0
    %v342 = vsel %vm340, %v321, 0.0
    %v343 = vpack.c.bf16 %v341, %v341
    %v344 = vpack.c.bf16 %v342, %v342
    %v347 = vunpack.c.l.b16 %v343
    %v348 = vunpack.c.l.b16 %v344
    %v349 = vpack.c.b16 %v348, %v347
    %v350 = vrot.slane %v349, 6
    %352 = vst [vmem:[#allocation2 + $0x18] sm:$0xcc] %v350
    %353 = vrot.lane.b32.xlu0 %v39, 111
    %v354 = vpop.permute.xlu0 %353
    %355 = vrot.lane.b32.xlu0 %v41, 111
    %v356 = vpop.permute.xlu0 %355
    %vm357 = vcmp.lt.s32.totalorder %v48, 111
    %v358 = vsel %vm357, %v354, %v356
    %v359 = vsel %vm357, %v356, %v354
    %vm360 = vmand %vm283, %vm136
    %v361 = vsel %vm360, 1, 0
    %v362 = vlaneseq
    %v363 = vshrl.u32 %v362, 7
    %v364 = vsub.s32 0, %v363
    %v365 = vrot.slane %v361, %v364
    %v366 = vlaneseq
    %v367 = vshrl.u32 %v366, 7
    %v368 = vsub.s32 2, %v367
    %v369 = vrot.slane %v361, %v368
    %v370 = vlaneseq
    %v371 = vshrl.u32 %v370, 7
    %v372 = vsub.s32 0, %v371
    %v373 = vrot.slane %v365, %v372
    %v374 = vlaneseq
    %v375 = vshrl.u32 %v374, 7
    %v376 = vsub.s32 0, %v375
    %v377 = vrot.slane %v369, %v376
    %vm378 = vcmp.eq.s32.totalorder %v373, 1
    %vm379 = vcmp.eq.s32.totalorder %v377, 1
    %v380 = vsel %vm378, %v358, 0.0
    %v381 = vsel %vm379, %v359, 0.0
    %v382 = vpack.c.bf16 %v380, %v380
    %v383 = vpack.c.bf16 %v381, %v381
    %v386 = vunpack.c.l.b16 %v382
    %v387 = vunpack.c.l.b16 %v383
    %v388 = vpack.c.b16 %v387, %v386
    %390 = vst [vmem:[#allocation2 + $0x20] sm:$0x33] %v388
    %v391 = vld [vmem:[#allocation2] sm:$0xff]
    %v392 = vld [vmem:[#allocation2 + $0x8] sm:$0xff]
    %v393 = vld [vmem:[#allocation2 + $0x10] sm:$0xff]
    %v394 = vld [vmem:[#allocation2 + $0x18] sm:$0xff]
    %v395 = vld [vmem:[#allocation2 + $0x20] sm:$0x33]
    %397 = vset.pattern.permute.xlu0 0
    %398 = vperm.xlu0 %397, %v34
    %v399 = vpop.permute.xlu0 %398
    %v406 = vunpack.c.l.b16 %v391
    %v407 = vunpack.c.h.b16 %v391
    %v408 = vunpack.c.l.b16 %v392
    %v409 = vunpack.c.h.b16 %v392
    %v410 = vunpack.c.l.b16 %v393
    %v411 = vunpack.c.h.b16 %v393
    %v412 = vunpack.c.l.b16 %v394
    %v413 = vunpack.c.h.b16 %v394
    %v414 = vunpack.c.l.b16 %v395
    %v415 = vunpack.c.h.b16 %v395
    %v416 = vpack.c.b16 %v408, %v406
    %v417 = vpack.c.b16 %v409, %v407
    %v418 = vpack.c.b16 %v412, %v410
    %v419 = vpack.c.b16 %v413, %v411
    %v420 = vpack.c.b16 %v414, %v414
    %v421 = vpack.c.b16 %v415, %v415
    %vm426 = vcmask 293888
    %v428 = vsel %vm426, %v33, 0
    %vm430 = vcmask 1041408
    %v432 = vsel %vm430, %v420, 0
    %v435 = vsel %vm430, %v421, 0
    %437 = vmatprep.subr.bf16.mxu0 %v417
    %438 = vmatpush1.bf16.msra.mxu0 %v416
    %439 = vmatprep.subr.bf16.mxu0 %v419
    %440 = vmatpush1.bf16.msra.mxu0 %v418
    %441 = vmatprep.subr.bf16.mxu0 %v435
    %442 = vmatpush1.bf16.msra.mxu0 %v432
    %443 = vmatprep.subr.bf16.mxu0 0
    %444 = vmatpush1.bf16.msra.mxu0 0
    %445 = vmatprep.subr.bf16.mxu0 0
    %446 = vmatpush1.bf16.msra.mxu0 0
    %447 = vmatprep.subr.bf16.mxu0 0
    %448 = vmatpush1.bf16.msra.mxu0 0
    %449 = vmatprep.subr.bf16.mxu0 0
    %450 = vmatpush1.bf16.msra.mxu0 0
    %451 = vmatprep.subr.bf16.mxu0 0
    %452 = vmatpush1.bf16.msra.mxu0 0
    %453 = vmatprep.subr.bf16.mxu0 0
    %454 = vmatpush1.bf16.msra.mxu0 0
    %455 = vmatprep.subr.bf16.mxu0 0
    %456 = vmatpush1.bf16.msra.mxu0 0
    %457 = vmatprep.subr.bf16.mxu0 0
    %458 = vmatpush1.bf16.msra.mxu0 0
    %459 = vmatprep.subr.bf16.mxu0 0
    %460 = vmatpush1.bf16.msra.mxu0 0
    %461 = vmatprep.subr.bf16.mxu0 0
    %462 = vmatpush1.bf16.msra.mxu0 0
    %463 = vmatprep.subr.bf16.mxu0 0
    %464 = vmatpush1.bf16.msra.mxu0 0
    %465 = vmatprep.subr.bf16.mxu0 0
    %466 = vmatpush1.bf16.msra.mxu0 0
    %467 = vmatprep.subr.bf16.mxu0 0
    %468 = vmatpush1.bf16.msra.mxu0 0
    %469 = vmatprep.mubr.bf16.mxu0 0
    %470 = vmatmul.mubr.bf16.gmra.mrb[0].mxu0 %v428
    %v471 = vpop.f32.mrb[0].mxu0
    %v472 = vadd.f32 %v399, %v471
    %v473 = vpop.f32.mrb[0].mxu0
    %v474 = vadd.f32 %v399, %v473
    %v475 = vpop.f32.mrb[0].mxu0
    %v476 = vpop.f32.mrb[0].mxu0
    %477 = vdwg.mxu0
    %478 = vst [vmem:[#allocation6] sm:$0xff] %v472
    %479 = vst [vmem:[#allocation6 + $0x8] sm:$0xff] %v474
    %s480 = scalar_lea.vmem [#allocation3], 8
    %v481 = vld [vmem:[%s480] sm:$0xff]
    %v483 = vcombine.high %v481, %v481
    %485 = vrot.lane.b32.xlu0 %v481, 17
    %v486 = vpop.permute.xlu0 %485
    %487 = vrot.lane.b32.xlu0 %v483, 17
    %v488 = vpop.permute.xlu0 %487
    %v489 = vsel %vm49, %v486, %v488
    %v490 = vsel %vm49, %v488, %v486
    %v491 = vsel %vm75, %v490, 0.0
    %v492 = vsel %vm76, %v489, 0.0
    %v493 = vpack.c.bf16 %v491, %v491
    %v494 = vpack.c.bf16 %v492, %v492
    %v497 = vunpack.c.l.b16 %v493
    %v498 = vunpack.c.l.b16 %v494
    %v499 = vpack.c.b16 %v498, %v497
    %501 = vst [vmem:[#allocation2] sm:$0x33] %v499
    %502 = vrot.lane.b32.xlu0 %v481, 16
    %v503 = vpop.permute.xlu0 %502
    %504 = vrot.lane.b32.xlu0 %v483, 16
    %v505 = vpop.permute.xlu0 %504
    %v506 = vsel %vm92, %v503, %v505
    %v507 = vsel %vm92, %v505, %v503
    %v508 = vsel %vm112, %v507, 0.0
    %v509 = vsel %vm113, %v506, 0.0
    %v510 = vpack.c.bf16 %v508, %v508
    %v511 = vpack.c.bf16 %v509, %v509
    %v514 = vunpack.c.l.b16 %v510
    %v515 = vunpack.c.l.b16 %v511
    %v516 = vpack.c.b16 %v515, %v514
    %v517 = vrot.slane %v516, 6
    %519 = vst [vmem:[#allocation2] sm:$0xcc] %v517
    %520 = vrot.lane.b32.xlu0 %v481, 15
    %v521 = vpop.permute.xlu0 %520
    %522 = vrot.lane.b32.xlu0 %v483, 15
    %v523 = vpop.permute.xlu0 %522
    %v524 = vsel %vm130, %v521, %v523
    %v525 = vsel %vm130, %v523, %v521
    %v526 = vsel %vm155, %v525, 0.0
    %v527 = vsel %vm156, %v524, 0.0
    %v528 = vpack.c.bf16 %v526, %v526
    %v529 = vpack.c.bf16 %v527, %v527
    %v532 = vunpack.c.l.b16 %v528
    %v533 = vunpack.c.l.b16 %v529
    %v534 = vpack.c.b16 %v533, %v532
    %536 = vst [vmem:[#allocation2 + $0x8] sm:$0x33] %v534
    %537 = vrot.lane.b32.xlu0 %v481, 1
    %v538 = vpop.permute.xlu0 %537
    %539 = vrot.lane.b32.xlu0 %v483, 1
    %v540 = vpop.permute.xlu0 %539
    %v541 = vsel %vm172, %v538, %v540
    %v542 = vsel %vm172, %v540, %v538
    %v543 = vsel %vm193, %v542, 0.0
    %v544 = vsel %vm194, %v541, 0.0
    %v545 = vpack.c.bf16 %v543, %v543
    %v546 = vpack.c.bf16 %v544, %v544
    %v549 = vunpack.c.l.b16 %v545
    %v550 = vunpack.c.l.b16 %v546
    %v551 = vpack.c.b16 %v550, %v549
    %v552 = vrot.slane %v551, 6
    %554 = vst [vmem:[#allocation2 + $0x8] sm:$0xcc] %v552
    %v555 = vsel %vm224, %v481, 0.0
    %v556 = vsel %vm225, %v483, 0.0
    %v557 = vpack.c.bf16 %v555, %v555
    %v558 = vpack.c.bf16 %v556, %v556
    %v561 = vunpack.c.l.b16 %v557
    %v562 = vunpack.c.l.b16 %v558
    %v563 = vpack.c.b16 %v562, %v561
    %565 = vst [vmem:[#allocation2 + $0x10] sm:$0x33] %v563
    %566 = vrot.lane.b32.xlu0 %v481, 127
    %v567 = vpop.permute.xlu0 %566
    %568 = vrot.lane.b32.xlu0 %v483, 127
    %v569 = vpop.permute.xlu0 %568
    %v570 = vsel %vm241, %v567, %v569
    %v571 = vsel %vm241, %v569, %v567
    %v572 = vsel %vm262, %v570, 0.0
    %v573 = vsel %vm263, %v571, 0.0
    %v574 = vpack.c.bf16 %v572, %v572
    %v575 = vpack.c.bf16 %v573, %v573
    %v578 = vunpack.c.l.b16 %v574
    %v579 = vunpack.c.l.b16 %v575
    %v580 = vpack.c.b16 %v579, %v578
    %v581 = vrot.slane %v580, 6
    %583 = vst [vmem:[#allocation2 + $0x10] sm:$0xcc] %v581
    %584 = vrot.lane.b32.xlu0 %v481, 113
    %v585 = vpop.permute.xlu0 %584
    %586 = vrot.lane.b32.xlu0 %v483, 113
    %v587 = vpop.permute.xlu0 %586
    %v588 = vsel %vm280, %v585, %v587
    %v589 = vsel %vm280, %v587, %v585
    %v590 = vsel %vm302, %v588, 0.0
    %v591 = vsel %vm303, %v589, 0.0
    %v592 = vpack.c.bf16 %v590, %v590
    %v593 = vpack.c.bf16 %v591, %v591
    %v596 = vunpack.c.l.b16 %v592
    %v597 = vunpack.c.l.b16 %v593
    %v598 = vpack.c.b16 %v597, %v596
    %600 = vst [vmem:[#allocation2 + $0x18] sm:$0x33] %v598
    %601 = vrot.lane.b32.xlu0 %v481, 112
    %v602 = vpop.permute.xlu0 %601
    %603 = vrot.lane.b32.xlu0 %v483, 112
    %v604 = vpop.permute.xlu0 %603
    %v605 = vsel %vm319, %v602, %v604
    %v606 = vsel %vm319, %v604, %v602
    %v607 = vsel %vm339, %v605, 0.0
    %v608 = vsel %vm340, %v606, 0.0
    %v609 = vpack.c.bf16 %v607, %v607
    %v610 = vpack.c.bf16 %v608, %v608
    %v613 = vunpack.c.l.b16 %v609
    %v614 = vunpack.c.l.b16 %v610
    %v615 = vpack.c.b16 %v614, %v613
    %v616 = vrot.slane %v615, 6
    %618 = vst [vmem:[#allocation2 + $0x18] sm:$0xcc] %v616
    %619 = vrot.lane.b32.xlu0 %v481, 111
    %v620 = vpop.permute.xlu0 %619
    %621 = vrot.lane.b32.xlu0 %v483, 111
    %v622 = vpop.permute.xlu0 %621
    %v623 = vsel %vm357, %v620, %v622
    %v624 = vsel %vm357, %v622, %v620
    %v625 = vsel %vm378, %v623, 0.0
    %v626 = vsel %vm379, %v624, 0.0
    %v627 = vpack.c.bf16 %v625, %v625
    %v628 = vpack.c.bf16 %v626, %v626
    %v631 = vunpack.c.l.b16 %v627
    %v632 = vunpack.c.l.b16 %v628
    %v633 = vpack.c.b16 %v632, %v631
    %635 = vst [vmem:[#allocation2 + $0x20] sm:$0x33] %v633
    %v636 = vld [vmem:[#allocation2] sm:$0xff]
    %v637 = vld [vmem:[#allocation2 + $0x8] sm:$0xff]
    %v638 = vld [vmem:[#allocation2 + $0x10] sm:$0xff]
    %v639 = vld [vmem:[#allocation2 + $0x18] sm:$0xff]
    %v640 = vld [vmem:[#allocation2 + $0x20] sm:$0x33]
    %v646 = vunpack.c.l.b16 %v636
    %v647 = vunpack.c.h.b16 %v636
    %v648 = vunpack.c.l.b16 %v637
    %v649 = vunpack.c.h.b16 %v637
    %v650 = vunpack.c.l.b16 %v638
    %v651 = vunpack.c.h.b16 %v638
    %v652 = vunpack.c.l.b16 %v639
    %v653 = vunpack.c.h.b16 %v639
    %v654 = vunpack.c.l.b16 %v640
    %v655 = vunpack.c.h.b16 %v640
    %v656 = vpack.c.b16 %v648, %v646
    %v657 = vpack.c.b16 %v649, %v647
    %v658 = vpack.c.b16 %v652, %v650
    %v659 = vpack.c.b16 %v653, %v651
    %v660 = vpack.c.b16 %v654, %v654
    %v661 = vpack.c.b16 %v655, %v655
    %v667 = vsel %vm430, %v660, 0
    %v670 = vsel %vm430, %v661, 0
    %672 = vmatprep.subr.bf16.mxu0 %v657
    %673 = vmatpush1.bf16.msra.mxu0 %v656
    %674 = vmatprep.subr.bf16.mxu0 %v659
    %675 = vmatpush1.bf16.msra.mxu0 %v658
    %676 = vmatprep.subr.bf16.mxu0 %v670
    %677 = vmatpush1.bf16.msra.mxu0 %v667
    %678 = vmatprep.subr.bf16.mxu0 0
    %679 = vmatpush1.bf16.msra.mxu0 0
    %680 = vmatprep.subr.bf16.mxu0 0
    %681 = vmatpush1.bf16.msra.mxu0 0
    %682 = vmatprep.subr.bf16.mxu0 0
    %683 = vmatpush1.bf16.msra.mxu0 0
    %684 = vmatprep.subr.bf16.mxu0 0
    %685 = vmatpush1.bf16.msra.mxu0 0
    %686 = vmatprep.subr.bf16.mxu0 0
    %687 = vmatpush1.bf16.msra.mxu0 0
    %688 = vmatprep.subr.bf16.mxu0 0
    %689 = vmatpush1.bf16.msra.mxu0 0
    %690 = vmatprep.subr.bf16.mxu0 0
    %691 = vmatpush1.bf16.msra.mxu0 0
    %692 = vmatprep.subr.bf16.mxu0 0
    %693 = vmatpush1.bf16.msra.mxu0 0
    %694 = vmatprep.subr.bf16.mxu0 0
    %695 = vmatpush1.bf16.msra.mxu0 0
    %696 = vmatprep.subr.bf16.mxu0 0
    %697 = vmatpush1.bf16.msra.mxu0 0
    %698 = vmatprep.subr.bf16.mxu0 0
    %699 = vmatpush1.bf16.msra.mxu0 0
    %700 = vmatprep.subr.bf16.mxu0 0
    %701 = vmatpush1.bf16.msra.mxu0 0
    %702 = vmatprep.subr.bf16.mxu0 0
    %703 = vmatpush1.bf16.msra.mxu0 0
    %704 = vmatprep.mubr.bf16.mxu0 0
    %705 = vmatmul.mubr.bf16.gmra.mrb[0].mxu0 %v428
    %v706 = vpop.f32.mrb[0].mxu0
    %v707 = vadd.f32 %v399, %v706
    %v708 = vpop.f32.mrb[0].mxu0
    %v709 = vadd.f32 %v399, %v708
    %v710 = vpop.f32.mrb[0].mxu0
    %v711 = vpop.f32.mrb[0].mxu0
    %712 = vdwg.mxu0
    %s713 = scalar_lea.vmem [#allocation6], 16
    %714 = vst [vmem:[%s713] sm:$0xff] %v707
    %715 = vst [vmem:[%s713 + $0x8] sm:$0xff] %v709
    // Predicated region
    $region22: #{tpu_custom_call.1} parent=1 // pred_check
      _
    $region23: #{tpu_custom_call.1} parent=1 // pred_check_branch
      %717 = sbr.rel (0) target = $region25
    $region24: #{tpu_custom_call.1} parent=1 // pred_region
      %s719 = ssub.s32 512, 512
      %720 = vsyncadd [#allocation5], %s719
      %s721 = sshll.u32 [#allocation6], 4
      %s722 = int_to_ptr.vmem [resolvable:$true] %s721
      %727 = dma.vmem_to_hbm [thread:$0]  %s722, 512, %s4, [#allocation5], 256, 256, 16
    $region25: #{tpu_custom_call.1} parent=1 // pred_fallthru
      _
    // Predicated region
    $region26: #{tpu_custom_call.1} parent=1 // pred_check
      _
    $region27: #{tpu_custom_call.1} parent=1 // pred_check_branch
      %729 = sbr.rel (0) target = $region29
    $region28: #{tpu_custom_call.1} parent=1 // pred_region
      %730 = dma.done [#allocation5], 512
    $region29: #{tpu_custom_call.1} parent=1 // pred_fallthru
      _
    %731 = vsyncpa [#allocation4], 1
    %732 = vsyncpa [#allocation5], 1

</llo_original>
